<compile_context>
chip_gen: v5e
topology: v5e:2x2
jax: 0.10.0
libtpu: 0.0.40
codegen_flags: <defaults>
</compile_context>

<pallas_src>
import functools

import jax
import jax.numpy as jnp
from jax.experimental import pallas as pl
from jax.experimental.pallas import tpu as pltpu


def _round_up(x, m):
    return (x + m - 1) // m * m


def transform_kernel(inv_n, x_ref, w1_ref, b1_ref, g_ref, beta_ref, w2_ref,
                     b2_ref, o_ref):
    # x_ref:    [TILE_B, C]   f32 (cast to bf16 in-kernel for the MXU)
    # w1_ref:   [C, C_out]    bf16 (conv1 weight, transposed)
    # b1_ref:   [1, C_out]    f32
    # g_ref:    [1, C_out]    f32 (LayerNorm gamma)
    # beta_ref: [1, C_out]    f32 (LayerNorm beta)
    # w2_ref:   [C_out, C]    bf16 (conv2 weight, transposed)
    # b2_ref:   [1, C]        f32
    # o_ref:    [TILE_B, C]   f32
    x = x_ref[...].astype(jnp.bfloat16)

    # conv1 (1x1) == per-sample linear: bf16 MXU inputs, f32 accumulation.
    h = jnp.dot(x, w1_ref[...], preferred_element_type=jnp.float32) + b1_ref[...]

    # LayerNorm over the reduced channel axis: two-pass stats, all in f32.
    mean = jnp.sum(h, axis=-1, keepdims=True) * inv_n
    d = h - mean
    var = jnp.sum(d * d, axis=-1, keepdims=True) * inv_n
    h_norm = d * jax.lax.rsqrt(var + 1e-5)
    h_norm = h_norm * g_ref[...] + beta_ref[...]

    # ReLU in f32, then drop to bf16 for the second MXU pass.
    h_act = jnp.maximum(h_norm, 0.0).astype(jnp.bfloat16)

    # conv2 (1x1) == per-sample linear back to C.
    out = jnp.dot(h_act, w2_ref[...], preferred_element_type=jnp.float32) + b2_ref[...]
    o_ref[...] = out.astype(o_ref.dtype)


def _vmem_capacity_bytes():
    try:
        return int(pltpu.get_tpu_info().vmem_capacity_bytes)
    except Exception:
        return 64 * 1024 * 1024  # conservative fallback (v7x per-TensorCore VMEM)


def _build_call(kernel_fn, b_pad, tile_b, C, c_out, vmem_limit, cost,
                single_buffer_params):
    if single_buffer_params:
        def const_spec(shape):
            return pl.BlockSpec(shape, lambda i: (0, 0),
                                pipeline_mode=pl.Buffered(1))
    else:
        def const_spec(shape):
            return pl.BlockSpec(shape, lambda i: (0, 0))

    return pl.pallas_call(
        kernel_fn,
        out_shape=jax.ShapeDtypeStruct((b_pad, C), jnp.float32),
        grid=(b_pad // tile_b,),
        in_specs=[
            pl.BlockSpec((tile_b, C), lambda i: (i, 0)),  # x (streamed)
            const_spec((C, c_out)),                       # w1 (VMEM-resident)
            const_spec((1, c_out)),                       # b1
            const_spec((1, c_out)),                       # gamma
            const_spec((1, c_out)),                       # beta
            const_spec((c_out, C)),                       # w2 (VMEM-resident)
            const_spec((1, C)),                           # b2
        ],
        out_specs=pl.BlockSpec((tile_b, C), lambda i: (i, 0)),
        compiler_params=pltpu.CompilerParams(
            dimension_semantics=("parallel",),
            vmem_limit_bytes=vmem_limit,
        ),
        cost_estimate=cost,
    )


def transform_forward(x_nchw, params, ratio):
    """x_nchw: [B, C, 1, 1] float32 -> [B, C, 1, 1] float32.

    params holds PyTorch-layout tensors:
      conv1_w [C_out, C], conv1_b [C_out], gamma [C_out], beta [C_out],
      conv2_w [C, C_out], conv2_b [C].
    """
    B, C, H, W = x_nchw.shape
    assert H == 1 and W == 1, "Transform expects [B, C, 1, 1] input"
    assert C % ratio == 0
    c_out = C // ratio

    # ---- VMEM limit / tile budget scale with the actual chip ----
    vmem_cap = _vmem_capacity_bytes()
    vmem_limit = int(min(vmem_cap // 2, 100 * 1024 * 1024))

    # Parameter footprint (budget 2x in case single-buffering falls back).
    param_bytes = 2 * (2 * C * c_out * 2 + 4 * (3 * c_out + C))
    # Per-row streaming + in-kernel f32 intermediates:
    #   x f32 (x2 buffers) + out f32 (x2) + bf16 x + f32 out temp ~ 22*C bytes,
    #   h/d/h_norm f32 + bf16 h_act ~ 14*c_out bytes.  Rounded up for headroom.
    row_bytes = 24 * C + 16 * c_out
    budget = int(vmem_limit * 0.8) - param_bytes
    tile_max = max(8, (max(budget, 0) // row_bytes) // 8 * 8)

    # ---- batch tiling: multiple of 8 (f32 sublane); keep >=2 grid steps
    # ---- (ideally ~8) for larger batches so v7x's two TCs both get work.
    b8 = _round_up(B, 8)
    if b8 >= 64:
        grid_target = 8
    elif b8 >= 32:
        grid_target = 2
    else:
        grid_target = 1
    tile_target = _round_up(-(-b8 // grid_target), 8)
    tile_b = max(8, min(tile_target, tile_max))
    b_pad = _round_up(B, tile_b)

    # ---- parameters in kernel layouts (tiny one-time conversions) ----
    w1 = params["conv1_w"].T.astype(jnp.bfloat16)                  # [C, c_out]
    b1 = params["conv1_b"].reshape(1, c_out).astype(jnp.float32)
    gamma = params["gamma"].reshape(1, c_out).astype(jnp.float32)
    beta = params["beta"].reshape(1, c_out).astype(jnp.float32)
    w2 = params["conv2_w"].T.astype(jnp.bfloat16)                  # [c_out, C]
    b2 = params["conv2_b"].reshape(1, C).astype(jnp.float32)

    # ---- streaming input: raw f32; batch-pad only when the last tile needs it
    x2d = x_nchw.reshape(B, C)
    if b_pad != B:
        x2d = jnp.pad(x2d, ((0, b_pad - B), (0, 0)))

    cost = pl.CostEstimate(
        flops=4 * b_pad * C * c_out,            # two matmuls
        transcendentals=b_pad,                  # one rsqrt per row
        bytes_accessed=b_pad * C * 8            # f32 in + f32 out
        + 2 * C * c_out * 2                     # bf16 weights
        + 4 * (3 * c_out + C),                  # f32 biases / gamma / beta
    )

    kernel_fn = functools.partial(transform_kernel, 1.0 / c_out)
    args = (x2d, w1, b1, gamma, beta, w2, b2)
    try:
        out2d = _build_call(kernel_fn, b_pad, tile_b, C, c_out, vmem_limit,
                            cost, single_buffer_params=True)(*args)
    except Exception:
        # TODO(synk): pl.Buffered(1) single-buffering of the constant parameter
        # blocks is not supported on this jax version; fall back to default
        # double buffering (slightly more VMEM; already covered by the budget).
        out2d = _build_call(kernel_fn, b_pad, tile_b, C, c_out, vmem_limit,
                            cost, single_buffer_params=False)(*args)

    if b_pad != B:
        out2d = out2d[:B]
    return out2d.reshape(B, C, 1, 1)


def init_params(key, in_channels, ratio):
    """Deterministic synthetic parameters in PyTorch layouts."""
    out_channels = in_channels // ratio
    k1, k2, k3, k4 = jax.random.split(key, 4)
    return {
        "conv1_w": jax.random.normal(k1, (out_channels, in_channels), jnp.float32) * 0.05,
        "conv1_b": jax.random.normal(k2, (out_channels,), jnp.float32) * 0.05,
        "gamma": jnp.ones((out_channels,), jnp.float32),   # LayerNorm default init
        "beta": jnp.zeros((out_channels,), jnp.float32),
        "conv2_w": jax.random.normal(k3, (in_channels, out_channels), jnp.float32) * 0.05,
        "conv2_b": jax.random.normal(k4, (in_channels,), jnp.float32) * 0.05,
    }


def _reference(x_nchw, params):
    """Pure-JAX f32 reference (channel-wise LayerNorm, GC-block intent)."""
    B, C = x_nchw.shape[0], x_nchw.shape[1]
    x2 = x_nchw.reshape(B, C)
    h = x2 @ params["conv1_w"].T + params["conv1_b"]
    mu = h.mean(-1, keepdims=True)
    var = ((h - mu) ** 2).mean(-1, keepdims=True)
    hn = (h - mu) * jax.lax.rsqrt(var + 1e-5) * params["gamma"] + params["beta"]
    out = jnp.maximum(hn, 0.0) @ params["conv2_w"].T + params["conv2_b"]
    return out.reshape(B, C, 1, 1)


if __name__ == "__main__":
    B, C, ratio = 16, 64, 4  # in_channels=64, out_channels=16

    key = jax.random.PRNGKey(0)
    kx, kp = jax.random.split(key)
    x = jax.random.normal(kx, (B, C, 1, 1), jnp.float32)  # NCHW, 1x1 spatial
    params = init_params(kp, C, ratio)

    out = transform_forward(x, params, ratio)
    jax.block_until_ready(out)
    assert out.shape == (B, C, 1, 1)

    ref = _reference(x, params)
    err = float(jnp.max(jnp.abs(out - ref)))
    assert jnp.allclose(out, ref, atol=5e-2, rtol=5e-2), f"max abs err {err}"

    print("KERNEL_OK")
</pallas_src>

<mosaic_0001>
module attributes {stable_mosaic.version = 11 : i64} {
  func.func @transform_kernel(%arg0: i32, %arg1: memref<16x64xf32, #tpu.memory_space<vmem>>, %arg2: memref<64x16xbf16, #tpu.memory_space<vmem>>, %arg3: memref<1x16xf32, #tpu.memory_space<vmem>>, %arg4: memref<1x16xf32, #tpu.memory_space<vmem>>, %arg5: memref<1x16xf32, #tpu.memory_space<vmem>>, %arg6: memref<16x64xbf16, #tpu.memory_space<vmem>>, %arg7: memref<1x64xf32, #tpu.memory_space<vmem>>, %arg8: memref<16x64xf32, #tpu.memory_space<vmem>>) attributes {dimension_semantics = [#tpu.dimension_semantics<parallel>], iteration_bounds = array<i64: 1>, scalar_prefetch = 0 : i64, scratch_operands = 0 : i64, tpu.core_type = #tpu.core_type<tc>, window_params = [{transform_indices = @transform_0, window_bounds = array<i64: 16, 64>}, {pipeline_mode = #tpu.pipeline_mode<synchronous>, transform_indices = @transform_1, window_bounds = array<i64: 64, 16>}, {pipeline_mode = #tpu.pipeline_mode<synchronous>, transform_indices = @transform_2, window_bounds = array<i64: 1, 16>}, {pipeline_mode = #tpu.pipeline_mode<synchronous>, transform_indices = @transform_3, window_bounds = array<i64: 1, 16>}, {pipeline_mode = #tpu.pipeline_mode<synchronous>, transform_indices = @transform_4, window_bounds = array<i64: 1, 16>}, {pipeline_mode = #tpu.pipeline_mode<synchronous>, transform_indices = @transform_5, window_bounds = array<i64: 16, 64>}, {pipeline_mode = #tpu.pipeline_mode<synchronous>, transform_indices = @transform_6, window_bounds = array<i64: 1, 64>}, {transform_indices = @transform_7, window_bounds = array<i64: 16, 64>}]} {
    %c0 = arith.constant 0 : index
    %c0_0 = arith.constant 0 : index
    %0 = vector.load %arg1[%c0, %c0_0] : memref<16x64xf32, #tpu.memory_space<vmem>>, vector<16x64xf32>
    %1 = arith.truncf %0 : vector<16x64xf32> to vector<16x64xbf16>
    %c0_1 = arith.constant 0 : index
    %c0_2 = arith.constant 0 : index
    %2 = vector.load %arg2[%c0_1, %c0_2] : memref<64x16xbf16, #tpu.memory_space<vmem>>, vector<64x16xbf16>
    %cst = arith.constant dense<0.000000e+00> : vector<16x16xf32>
    %3 = tpu.matmul %1, %2, %cst {dimension_numbers = #tpu.dot_dimension_numbers<[1], [0], [0], [1], [0, 0, 1, 1], [], []>} : vector<16x64xbf16>, vector<64x16xbf16>, vector<16x16xf32> -> vector<16x16xf32>
    %c0_3 = arith.constant 0 : index
    %c0_4 = arith.constant 0 : index
    %4 = vector.load %arg3[%c0_3, %c0_4] : memref<1x16xf32, #tpu.memory_space<vmem>>, vector<1x16xf32>
    %5 = vector.broadcast %4 : vector<1x16xf32> to vector<16x16xf32>
    %6 = arith.addf %3, %5 : vector<16x16xf32>
    %cst_5 = arith.constant dense<0.000000e+00> : vector<16xf32>
    %7 = vector.multi_reduction <add>, %6, %cst_5 [1] : vector<16x16xf32> to vector<16xf32>
    %8 = vector.shape_cast %7 : vector<16xf32> to vector<16x1xf32>
    %cst_6 = arith.constant 6.250000e-02 : f32
    %9 = vector.broadcast %cst_6 : f32 to vector<16x1xf32>
    %10 = arith.mulf %8, %9 : vector<16x1xf32>
    %11 = vector.broadcast %10 : vector<16x1xf32> to vector<16x16xf32>
    %12 = arith.subf %6, %11 : vector<16x16xf32>
    %13 = arith.mulf %12, %12 : vector<16x16xf32>
    %cst_7 = arith.constant dense<0.000000e+00> : vector<16xf32>
    %14 = vector.multi_reduction <add>, %13, %cst_7 [1] : vector<16x16xf32> to vector<16xf32>
    %15 = vector.shape_cast %14 : vector<16xf32> to vector<16x1xf32>
    %cst_8 = arith.constant 6.250000e-02 : f32
    %16 = vector.broadcast %cst_8 : f32 to vector<16x1xf32>
    %17 = arith.mulf %15, %16 : vector<16x1xf32>
    %cst_9 = arith.constant 9.99999974E-6 : f32
    %18 = vector.broadcast %cst_9 : f32 to vector<16x1xf32>
    %19 = arith.addf %17, %18 : vector<16x1xf32>
    %20 = math.rsqrt %19 : vector<16x1xf32>
    %21 = vector.broadcast %20 : vector<16x1xf32> to vector<16x16xf32>
    %22 = arith.mulf %12, %21 : vector<16x16xf32>
    %c0_10 = arith.constant 0 : index
    %c0_11 = arith.constant 0 : index
    %23 = vector.load %arg4[%c0_10, %c0_11] : memref<1x16xf32, #tpu.memory_space<vmem>>, vector<1x16xf32>
    %24 = vector.broadcast %23 : vector<1x16xf32> to vector<16x16xf32>
    %25 = arith.mulf %22, %24 : vector<16x16xf32>
    %c0_12 = arith.constant 0 : index
    %c0_13 = arith.constant 0 : index
    %26 = vector.load %arg5[%c0_12, %c0_13] : memref<1x16xf32, #tpu.memory_space<vmem>>, vector<1x16xf32>
    %27 = vector.broadcast %26 : vector<1x16xf32> to vector<16x16xf32>
    %28 = arith.addf %25, %27 : vector<16x16xf32>
    %cst_14 = arith.constant 0.000000e+00 : f32
    %29 = vector.broadcast %cst_14 : f32 to vector<16x16xf32>
    %30 = arith.maximumf %28, %29 : vector<16x16xf32>
    %31 = arith.truncf %30 : vector<16x16xf32> to vector<16x16xbf16>
    %c0_15 = arith.constant 0 : index
    %c0_16 = arith.constant 0 : index
    %32 = vector.load %arg6[%c0_15, %c0_16] : memref<16x64xbf16, #tpu.memory_space<vmem>>, vector<16x64xbf16>
    %cst_17 = arith.constant dense<0.000000e+00> : vector<16x64xf32>
    %33 = tpu.matmul %31, %32, %cst_17 {dimension_numbers = #tpu.dot_dimension_numbers<[1], [0], [0], [1], [0, 0, 1, 1], [], []>} : vector<16x16xbf16>, vector<16x64xbf16>, vector<16x64xf32> -> vector<16x64xf32>
    %c0_18 = arith.constant 0 : index
    %c0_19 = arith.constant 0 : index
    %34 = vector.load %arg7[%c0_18, %c0_19] : memref<1x64xf32, #tpu.memory_space<vmem>>, vector<1x64xf32>
    %35 = vector.broadcast %34 : vector<1x64xf32> to vector<16x64xf32>
    %36 = arith.addf %33, %35 : vector<16x64xf32>
    %c0_20 = arith.constant 0 : index
    %c0_21 = arith.constant 0 : index
    %37 = vector.load %arg8[%c0_20, %c0_21] : memref<16x64xf32, #tpu.memory_space<vmem>>, vector<16x64xf32>
    tpu.vector_store %arg8[%c0_20, %c0_21], %36 {strides = array<i32>} : memref<16x64xf32, #tpu.memory_space<vmem>>, vector<16x64xf32>,
    return
  }
  func.func @transform_0(%arg0: i32) -> (i32, i32) {
    %c0_i32 = arith.constant 0 : i32
    %c0_i32_0 = arith.constant 0 : i32
    return %arg0, %c0_i32 : i32, i32
  }
  func.func @transform_1(%arg0: i32) -> (i32, i32) {
    %c0_i32 = arith.constant 0 : i32
    %c0_i32_0 = arith.constant 0 : i32
    %c0_i32_1 = arith.constant 0 : i32
    return %c0_i32, %c0_i32_0 : i32, i32
  }
  func.func @transform_2(%arg0: i32) -> (i32, i32) {
    %c0_i32 = arith.constant 0 : i32
    %c0_i32_0 = arith.constant 0 : i32
    %c0_i32_1 = arith.constant 0 : i32
    return %c0_i32, %c0_i32_0 : i32, i32
  }
  func.func @transform_3(%arg0: i32) -> (i32, i32) {
    %c0_i32 = arith.constant 0 : i32
    %c0_i32_0 = arith.constant 0 : i32
    %c0_i32_1 = arith.constant 0 : i32
    return %c0_i32, %c0_i32_0 : i32, i32
  }
  func.func @transform_4(%arg0: i32) -> (i32, i32) {
    %c0_i32 = arith.constant 0 : i32
    %c0_i32_0 = arith.constant 0 : i32
    %c0_i32_1 = arith.constant 0 : i32
    return %c0_i32, %c0_i32_0 : i32, i32
  }
  func.func @transform_5(%arg0: i32) -> (i32, i32) {
    %c0_i32 = arith.constant 0 : i32
    %c0_i32_0 = arith.constant 0 : i32
    %c0_i32_1 = arith.constant 0 : i32
    return %c0_i32, %c0_i32_0 : i32, i32
  }
  func.func @transform_6(%arg0: i32) -> (i32, i32) {
    %c0_i32 = arith.constant 0 : i32
    %c0_i32_0 = arith.constant 0 : i32
    %c0_i32_1 = arith.constant 0 : i32
    return %c0_i32, %c0_i32_0 : i32, i32
  }
  func.func @transform_7(%arg0: i32) -> (i32, i32) {
    %c0_i32 = arith.constant 0 : i32
    %c0_i32_0 = arith.constant 0 : i32
    return %arg0, %c0_i32 : i32, i32
  }
}

module attributes {stable_mosaic.version = 11 : i64} {
  func.func @transform_kernel(%arg0: i32, %arg1: memref<16x64xf32, #tpu.memory_space<vmem>>, %arg2: memref<64x16xbf16, #tpu.memory_space<vmem>>, %arg3: memref<1x16xf32, #tpu.memory_space<vmem>>, %arg4: memref<1x16xf32, #tpu.memory_space<vmem>>, %arg5: memref<1x16xf32, #tpu.memory_space<vmem>>, %arg6: memref<16x64xbf16, #tpu.memory_space<vmem>>, %arg7: memref<1x64xf32, #tpu.memory_space<vmem>>, %arg8: memref<16x64xf32, #tpu.memory_space<vmem>>) attributes {dimension_semantics = [#tpu.dimension_semantics<parallel>], iteration_bounds = array<i64: 1>, scalar_prefetch = 0 : i64, scratch_operands = 0 : i64, tpu.core_type = #tpu.core_type<tc>, window_params = [{transform_indices = @transform_0, window_bounds = array<i64: 16, 64>}, {pipeline_mode = #tpu.pipeline_mode<synchronous>, transform_indices = @transform_1, window_bounds = array<i64: 64, 16>}, {pipeline_mode = #tpu.pipeline_mode<synchronous>, transform_indices = @transform_2, window_bounds = array<i64: 1, 16>}, {pipeline_mode = #tpu.pipeline_mode<synchronous>, transform_indices = @transform_3, window_bounds = array<i64: 1, 16>}, {pipeline_mode = #tpu.pipeline_mode<synchronous>, transform_indices = @transform_4, window_bounds = array<i64: 1, 16>}, {pipeline_mode = #tpu.pipeline_mode<synchronous>, transform_indices = @transform_5, window_bounds = array<i64: 16, 64>}, {pipeline_mode = #tpu.pipeline_mode<synchronous>, transform_indices = @transform_6, window_bounds = array<i64: 1, 64>}, {transform_indices = @transform_7, window_bounds = array<i64: 16, 64>}]} {
    %c0 = arith.constant 0 : index
    %c0_0 = arith.constant 0 : index
    %0 = vector.load %arg1[%c0, %c0_0] : memref<16x64xf32, #tpu.memory_space<vmem>>, vector<16x64xf32>
    %1 = arith.truncf %0 : vector<16x64xf32> to vector<16x64xbf16>
    %c0_1 = arith.constant 0 : index
    %c0_2 = arith.constant 0 : index
    %2 = vector.load %arg2[%c0_1, %c0_2] : memref<64x16xbf16, #tpu.memory_space<vmem>>, vector<64x16xbf16>
    %cst = arith.constant dense<0.000000e+00> : vector<16x16xf32>
    %3 = tpu.matmul %1, %2, %cst {dimension_numbers = #tpu.dot_dimension_numbers<[1], [0], [0], [1], [0, 0, 1, 1], [], []>} : vector<16x64xbf16>, vector<64x16xbf16>, vector<16x16xf32> -> vector<16x16xf32>
    %c0_3 = arith.constant 0 : index
    %c0_4 = arith.constant 0 : index
    %4 = vector.load %arg3[%c0_3, %c0_4] : memref<1x16xf32, #tpu.memory_space<vmem>>, vector<1x16xf32>
    %5 = vector.broadcast %4 : vector<1x16xf32> to vector<16x16xf32>
    %6 = arith.addf %3, %5 : vector<16x16xf32>
    %cst_5 = arith.constant dense<0.000000e+00> : vector<16xf32>
    %7 = vector.multi_reduction <add>, %6, %cst_5 [1] : vector<16x16xf32> to vector<16xf32>
    %8 = vector.shape_cast %7 : vector<16xf32> to vector<16x1xf32>
    %cst_6 = arith.constant 6.250000e-02 : f32
    %9 = vector.broadcast %cst_6 : f32 to vector<16x1xf32>
    %10 = arith.mulf %8, %9 : vector<16x1xf32>
    %11 = vector.broadcast %10 : vector<16x1xf32> to vector<16x16xf32>
    %12 = arith.subf %6, %11 : vector<16x16xf32>
    %13 = arith.mulf %12, %12 : vector<16x16xf32>
    %cst_7 = arith.constant dense<0.000000e+00> : vector<16xf32>
    %14 = vector.multi_reduction <add>, %13, %cst_7 [1] : vector<16x16xf32> to vector<16xf32>
    %15 = vector.shape_cast %14 : vector<16xf32> to vector<16x1xf32>
    %cst_8 = arith.constant 6.250000e-02 : f32
    %16 = vector.broadcast %cst_8 : f32 to vector<16x1xf32>
    %17 = arith.mulf %15, %16 : vector<16x1xf32>
    %cst_9 = arith.constant 9.99999974E-6 : f32
    %18 = vector.broadcast %cst_9 : f32 to vector<16x1xf32>
    %19 = arith.addf %17, %18 : vector<16x1xf32>
    %20 = math.rsqrt %19 : vector<16x1xf32>
    %21 = vector.broadcast %20 : vector<16x1xf32> to vector<16x16xf32>
    %22 = arith.mulf %12, %21 : vector<16x16xf32>
    %c0_10 = arith.constant 0 : index
    %c0_11 = arith.constant 0 : index
    %23 = vector.load %arg4[%c0_10, %c0_11] : memref<1x16xf32, #tpu.memory_space<vmem>>, vector<1x16xf32>
    %24 = vector.broadcast %23 : vector<1x16xf32> to vector<16x16xf32>
    %25 = arith.mulf %22, %24 : vector<16x16xf32>
    %c0_12 = arith.constant 0 : index
    %c0_13 = arith.constant 0 : index
    %26 = vector.load %arg5[%c0_12, %c0_13] : memref<1x16xf32, #tpu.memory_space<vmem>>, vector<1x16xf32>
    %27 = vector.broadcast %26 : vector<1x16xf32> to vector<16x16xf32>
    %28 = arith.addf %25, %27 : vector<16x16xf32>
    %cst_14 = arith.constant 0.000000e+00 : f32
    %29 = vector.broadcast %cst_14 : f32 to vector<16x16xf32>
    %30 = arith.maximumf %28, %29 : vector<16x16xf32>
    %31 = arith.truncf %30 : vector<16x16xf32> to vector<16x16xbf16>
    %c0_15 = arith.constant 0 : index
    %c0_16 = arith.constant 0 : index
    %32 = vector.load %arg6[%c0_15, %c0_16] : memref<16x64xbf16, #tpu.memory_space<vmem>>, vector<16x64xbf16>
    %cst_17 = arith.constant dense<0.000000e+00> : vector<16x64xf32>
    %33 = tpu.matmul %31, %32, %cst_17 {dimension_numbers = #tpu.dot_dimension_numbers<[1], [0], [0], [1], [0, 0, 1, 1], [], []>} : vector<16x16xbf16>, vector<16x64xbf16>, vector<16x64xf32> -> vector<16x64xf32>
    %c0_18 = arith.constant 0 : index
    %c0_19 = arith.constant 0 : index
    %34 = vector.load %arg7[%c0_18, %c0_19] : memref<1x64xf32, #tpu.memory_space<vmem>>, vector<1x64xf32>
    %35 = vector.broadcast %34 : vector<1x64xf32> to vector<16x64xf32>
    %36 = arith.addf %33, %35 : vector<16x64xf32>
    %c0_20 = arith.constant 0 : index
    %c0_21 = arith.constant 0 : index
    %37 = vector.load %arg8[%c0_20, %c0_21] : memref<16x64xf32, #tpu.memory_space<vmem>>, vector<16x64xf32>
    tpu.vector_store %arg8[%c0_20, %c0_21], %36 {strides = array<i32>} : memref<16x64xf32, #tpu.memory_space<vmem>>, vector<16x64xf32>,
    return
  }
  func.func @transform_0(%arg0: i32) -> (i32, i32) {
    %c0_i32 = arith.constant 0 : i32
    %c0_i32_0 = arith.constant 0 : i32
    return %arg0, %c0_i32 : i32, i32
  }
  func.func @transform_1(%arg0: i32) -> (i32, i32) {
    %c0_i32 = arith.constant 0 : i32
    %c0_i32_0 = arith.constant 0 : i32
    %c0_i32_1 = arith.constant 0 : i32
    return %c0_i32, %c0_i32_0 : i32, i32
  }
  func.func @transform_2(%arg0: i32) -> (i32, i32) {
    %c0_i32 = arith.constant 0 : i32
    %c0_i32_0 = arith.constant 0 : i32
    %c0_i32_1 = arith.constant 0 : i32
    return %c0_i32, %c0_i32_0 : i32, i32
  }
  func.func @transform_3(%arg0: i32) -> (i32, i32) {
    %c0_i32 = arith.constant 0 : i32
    %c0_i32_0 = arith.constant 0 : i32
    %c0_i32_1 = arith.constant 0 : i32
    return %c0_i32, %c0_i32_0 : i32, i32
  }
  func.func @transform_4(%arg0: i32) -> (i32, i32) {
    %c0_i32 = arith.constant 0 : i32
    %c0_i32_0 = arith.constant 0 : i32
    %c0_i32_1 = arith.constant 0 : i32
    return %c0_i32, %c0_i32_0 : i32, i32
  }
  func.func @transform_5(%arg0: i32) -> (i32, i32) {
    %c0_i32 = arith.constant 0 : i32
    %c0_i32_0 = arith.constant 0 : i32
    %c0_i32_1 = arith.constant 0 : i32
    return %c0_i32, %c0_i32_0 : i32, i32
  }
  func.func @transform_6(%arg0: i32) -> (i32, i32) {
    %c0_i32 = arith.constant 0 : i32
    %c0_i32_0 = arith.constant 0 : i32
    %c0_i32_1 = arith.constant 0 : i32
    return %c0_i32, %c0_i32_0 : i32, i32
  }
  func.func @transform_7(%arg0: i32) -> (i32, i32) {
    %c0_i32 = arith.constant 0 : i32
    %c0_i32_0 = arith.constant 0 : i32
    return %arg0, %c0_i32 : i32, i32
  }
}

</mosaic_0001>

<llo_original>
// kernel: tpu_custom_call.1
$region0: #{tpu_custom_call.1}
  #allocation0 [shape = 'u32[]', space=smem, size = 0x4, offset = 0x4, fixed_abs, tag = 'smem constant byte address 0x4 - core index']
  #allocation1 [shape = 'u32[72,128]{1,0:T(1,128)}', space=vmem, size = 0x9000, scoped, tag = 'internal scratch']
  %s0 = inlined_call_operand.vmem [shape: f32[16,64], index: 0, kind: input, shape index: {}]
  %s1 = inlined_call_operand.vmem [shape: bf16[64,16], index: 1, kind: input, shape index: {}]
  %s2 = inlined_call_operand.vmem [shape: f32[1,16], index: 2, kind: input, shape index: {}]
  %s3 = inlined_call_operand.vmem [shape: f32[1,16], index: 3, kind: input, shape index: {}]
  %s4 = inlined_call_operand.vmem [shape: f32[1,16], index: 4, kind: input, shape index: {}]
  %s5 = inlined_call_operand.vmem [shape: bf16[16,64], index: 5, kind: input, shape index: {}]
  %s6 = inlined_call_operand.vmem [shape: f32[1,64], index: 6, kind: input, shape index: {}]
  %s7 = inlined_call_operand.hbm [shape: f32[16,64], index: 7, kind: output, shape index: {}]
  %s8 = sld [smem:[#allocation0]]
  $region38: #{tpu_custom_call.1} parent=0
    _
  %s10 = ssub.s32 1, %s8
  %s11 = scalar_select 0, %s10, %s8
  $region1: #{tpu_custom_call.1} parent=0
    #allocation2 [shape = 'u8[8192]{0}', space=vmem, size = 0x2000, scoped, tag = 'output window, operand 0, single buffered']
    #allocation3 [shape = 's32[1]{0}', space=sflag, size = 0x4, scoped, tag = 'scoped memory for tpu_custom_call.1']
    %12 = vsyncpa [#allocation3], 0
    // Predicated region
    $region2: #{tpu_custom_call.1} parent=1 // pred_check
      _
    $region3: #{tpu_custom_call.1} parent=1 // pred_check_branch
      %14 = sbr.rel (0) target = $region5
    $region4: #{tpu_custom_call.1} parent=1 // pred_region
      _
    $region5: #{tpu_custom_call.1} parent=1 // pred_fallthru
      _
    // Predicated region
    $region6: #{tpu_custom_call.1} parent=1 // pred_check
      _
    $region7: #{tpu_custom_call.1} parent=1 // pred_check_branch
      %16 = sbr.rel (0) target = $region9
    $region8: #{tpu_custom_call.1} parent=1 // pred_region
      _
    $region9: #{tpu_custom_call.1} parent=1 // pred_fallthru
      _
    // Predicated region
    $region10: #{tpu_custom_call.1} parent=1 // pred_check
      _
    $region11: #{tpu_custom_call.1} parent=1 // pred_check_branch
      %18 = sbr.rel (0) target = $region13
    $region12: #{tpu_custom_call.1} parent=1 // pred_region
      _
    $region13: #{tpu_custom_call.1} parent=1 // pred_fallthru
      _
    // Predicated region
    $region14: #{tpu_custom_call.1} parent=1 // pred_check
      _
    $region15: #{tpu_custom_call.1} parent=1 // pred_check_branch
      %20 = sbr.rel (0) target = $region17
    $region16: #{tpu_custom_call.1} parent=1 // pred_region
      _
    $region17: #{tpu_custom_call.1} parent=1 // pred_fallthru
      _
    // Predicated region
    $region18: #{tpu_custom_call.1} parent=1 // pred_check
      _
    $region19: #{tpu_custom_call.1} parent=1 // pred_check_branch
      %22 = sbr.rel (0) target = $region21
    $region20: #{tpu_custom_call.1} parent=1 // pred_region
      _
    $region21: #{tpu_custom_call.1} parent=1 // pred_fallthru
      _
    // Predicated region
    $region22: #{tpu_custom_call.1} parent=1 // pred_check
      _
    $region23: #{tpu_custom_call.1} parent=1 // pred_check_branch
      %24 = sbr.rel (0) target = $region25
    $region24: #{tpu_custom_call.1} parent=1 // pred_region
      _
    $region25: #{tpu_custom_call.1} parent=1 // pred_fallthru
      _
    // Predicated region
    $region26: #{tpu_custom_call.1} parent=1 // pred_check
      _
    $region27: #{tpu_custom_call.1} parent=1 // pred_check_branch
      %26 = sbr.rel (0) target = $region29
    $region28: #{tpu_custom_call.1} parent=1 // pred_region
      _
    $region29: #{tpu_custom_call.1} parent=1 // pred_fallthru
      _
    %v28 = vld [vmem:[%s0] sm:$0xff]
    %v29 = vld [vmem:[%s0 + $0x8] sm:$0xff]
    %v30 = vpack.c.bf16 %v29, %v28
    %v31 = vld [vmem:[%s1] sm:$0xf]
    %v32 = vld [vmem:[%s1 + $0x4] sm:$0xf]
    %v33 = vld [vmem:[%s1 + $0x8] sm:$0xf]
    %v34 = vld [vmem:[%s1 + $0xc] sm:$0xf]
    %v35 = vld [vmem:[%s1 + $0x10] sm:$0xf]
    %v36 = vld [vmem:[%s1 + $0x14] sm:$0xf]
    %v37 = vld [vmem:[%s1 + $0x18] sm:$0xf]
    %v38 = vld [vmem:[%s1 + $0x1c] sm:$0xf]
    %v39 = vld [vmem:[%s2] sm:$0x1]
    %v41 = vperm.slane %v39, 0
    %v51 = vunpack.c.l.b16 %v31
    %v52 = vunpack.c.l.b16 %v32
    %v53 = vunpack.c.l.b16 %v33
    %v54 = vunpack.c.l.b16 %v34
    %v55 = vunpack.c.l.b16 %v35
    %v56 = vunpack.c.l.b16 %v36
    %v57 = vunpack.c.l.b16 %v37
    %v58 = vunpack.c.l.b16 %v38
    %v59 = vpack.c.b16 %v52, %v51
    %v60 = vpack.c.b16 %v54, %v53
    %v61 = vpack.c.b16 %v56, %v55
    %v62 = vpack.c.b16 %v58, %v57
    %vm67 = vcmask 523264
    %v69 = vsel %vm67, %v30, 0
    %71 = vmatpush.bf16.msra.mxu0 0
    %72 = vmatpush.bf16.msra.mxu0 0
    %73 = vmatpush.bf16.msra.mxu0 0
    %74 = vmatpush.bf16.msra.mxu0 0
    %75 = vmatpush.bf16.msra.mxu0 %v62
    %76 = vmatpush.bf16.msra.mxu0 %v61
    %77 = vmatpush.bf16.msra.mxu0 %v60
    %78 = vmatpush.bf16.msra.mxu0 %v59
    %79 = vmatmul.bf16.gmra.mxu0 %v69
    %v80 = vpop.f32.mrf.mxu0
    %v81 = vadd.f32 %v41, %v80
    %v82 = vpop.f32.mrf.mxu0
    %v83 = vadd.f32 %v41, %v82
    %84 = vdwg.mxu0
    %vm85 = vcmask 130048
    %v86 = vsel %vm85, %v81, 0.0
    %87 = vadd.xlane.f32.xlu0 %v86
    %v88 = vpop.xlane.xlu0 %87
    %v89 = vsel %vm85, %v83, 0.0
    %90 = vadd.xlane.f32.xlu0 %v89
    %v91 = vpop.xlane.xlu0 %90
    %v92 = vmul.f32 %v88, 0.0625
    %v93 = vmul.f32 %v91, 0.0625
    %v94 = vsub.f32 %v81, %v92
    %v95 = vsub.f32 %v83, %v93
    %v96 = vmul.f32 %v94, %v94
    %v97 = vmul.f32 %v95, %v95
    %v98 = vsel %vm85, %v96, 0.0
    %99 = vadd.xlane.f32.xlu0 %v98
    %v100 = vpop.xlane.xlu0 %99
    %v101 = vsel %vm85, %v97, 0.0
    %102 = vadd.xlane.f32.xlu0 %v101
    %v103 = vpop.xlane.xlu0 %102
    %v104 = vmul.f32 %v100, 0.0625
    %v105 = vmul.f32 %v103, 0.0625
    %v106 = vadd.f32 %v104, 1e-05
    %v107 = vadd.f32 %v105, 1e-05
    %v108 = vrsqrt.pop %v106
    %v109 = vmul.f32 %v108, %v106
    %v110 = vmul.f32 %v109, %v108
    %v111 = vmul.f32 0.5, %v110
    %v112 = vsub.f32 1.5, %v111
    %v113 = vmul.f32 %v108, %v112
    %vm114 = vweird.f32 %v106
    %vm115 = vweird.f32 %v108
    %vm116 = vmor %vm114, %vm115
    %v117 = vsel %vm116, %v108, %v113
    %v118 = vrsqrt.pop %v107
    %v119 = vmul.f32 %v118, %v107
    %v120 = vmul.f32 %v119, %v118
    %v121 = vmul.f32 0.5, %v120
    %v122 = vsub.f32 1.5, %v121
    %v123 = vmul.f32 %v118, %v122
    %vm124 = vweird.f32 %v107
    %vm125 = vweird.f32 %v118
    %vm126 = vmor %vm124, %vm125
    %v127 = vsel %vm126, %v118, %v123
    %v128 = vmul.f32 %v94, %v117
    %v129 = vmul.f32 %v95, %v127
    %v130 = vld [vmem:[%s3] sm:$0x1]
    %v132 = vperm.slane %v130, 0
    %v134 = vmul.f32 %v128, %v132
    %v135 = vmul.f32 %v129, %v132
    %v136 = vld [vmem:[%s4] sm:$0x1]
    %v138 = vperm.slane %v136, 0
    %v140 = vadd.f32 %v134, %v138
    %v141 = vadd.f32 %v135, %v138
    %v142 = vmax.f32 %v140, 0.0
    %v143 = vmax.f32 %v141, 0.0
    %v144 = vpack.c.bf16 %v143, %v142
    %v145 = vld [vmem:[%s5] sm:$0xf]
    %v146 = vld [vmem:[%s5 + $0x4] sm:$0xf]
    %v147 = vld [vmem:[%s6] sm:$0x1]
    %v149 = vperm.slane %v147, 0
    %v153 = vunpack.c.l.b16 %v145
    %v154 = vunpack.c.l.b16 %v146
    %v155 = vpack.c.b16 %v154, %v153
    %v158 = vsel %vm85, %v144, 0
    %160 = vmatpush.bf16.msra.mxu0 0
    %161 = vmatpush.bf16.msra.mxu0 0
    %162 = vmatpush.bf16.msra.mxu0 0
    %163 = vmatpush.bf16.msra.mxu0 0
    %164 = vmatpush.bf16.msra.mxu0 0
    %165 = vmatpush.bf16.msra.mxu0 0
    %166 = vmatpush.bf16.msra.mxu0 0
    %167 = vmatpush.bf16.msra.mxu0 %v155
    %168 = vmatmul.bf16.gmra.mxu0 %v158
    %v169 = vpop.f32.mrf.mxu0
    %v170 = vadd.f32 %v149, %v169
    %v171 = vpop.f32.mrf.mxu0
    %v172 = vadd.f32 %v149, %v171
    %173 = vdwg.mxu0
    %174 = vst.msk [vmem:[#allocation2] sm:$0xff] %vm67, %v170
    %175 = vst.msk [vmem:[#allocation2 + $0x8] sm:$0xff] %vm67, %v172
    // Predicated region
    $region30: #{tpu_custom_call.1} parent=1 // pred_check
      _
    $region31: #{tpu_custom_call.1} parent=1 // pred_check_branch
      %177 = sbr.rel (0) target = $region33
    $region32: #{tpu_custom_call.1} parent=1 // pred_region
      %179 = vsyncadd [#allocation3], 0
      %s180 = sshll.u32 [#allocation2], 4
      %s181 = int_to_ptr.vmem [resolvable:$true] %s180
      %s182 = sshll.u32 %s7, 4
      %s183 = int_to_ptr.hbm [resolvable:$true] %s182
      %188 = dma.vmem_to_hbm [thread:$0]  %s181, 256, %s183, [#allocation3], 128, 128, 8
    $region33: #{tpu_custom_call.1} parent=1 // pred_fallthru
      _
    // Predicated region
    $region34: #{tpu_custom_call.1} parent=1 // pred_check
      _
    $region35: #{tpu_custom_call.1} parent=1 // pred_check_branch
      %190 = sbr.rel (0) target = $region37
    $region36: #{tpu_custom_call.1} parent=1 // pred_region
      %192 = dma.done [#allocation3], 256
    $region37: #{tpu_custom_call.1} parent=1 // pred_fallthru
      _
    %193 = vsyncpa [#allocation3], 1

// kernel: tpu_custom_call.1
$region0: #{tpu_custom_call.1}
  #allocation0 [shape = 'u32[]', space=smem, size = 0x4, offset = 0x4, fixed_abs, tag = 'smem constant byte address 0x4 - core index']
  #allocation1 [shape = 'u32[72,128]{1,0:T(1,128)}', space=vmem, size = 0x9000, scoped, tag = 'internal scratch']
  %s0 = inlined_call_operand.vmem [shape: f32[16,64], index: 0, kind: input, shape index: {}]
  %s1 = inlined_call_operand.vmem [shape: bf16[64,16], index: 1, kind: input, shape index: {}]
  %s2 = inlined_call_operand.vmem [shape: f32[1,16], index: 2, kind: input, shape index: {}]
  %s3 = inlined_call_operand.vmem [shape: f32[1,16], index: 3, kind: input, shape index: {}]
  %s4 = inlined_call_operand.vmem [shape: f32[1,16], index: 4, kind: input, shape index: {}]
  %s5 = inlined_call_operand.vmem [shape: bf16[16,64], index: 5, kind: input, shape index: {}]
  %s6 = inlined_call_operand.vmem [shape: f32[1,64], index: 6, kind: input, shape index: {}]
  %s7 = inlined_call_operand.hbm [shape: f32[16,64], index: 7, kind: output, shape index: {}]
  %s8 = sld [smem:[#allocation0]]
  $region38: #{tpu_custom_call.1} parent=0
    _
  %s10 = ssub.s32 1, %s8
  %s11 = scalar_select 0, %s10, %s8
  $region1: #{tpu_custom_call.1} parent=0
    #allocation2 [shape = 'u8[8192]{0}', space=vmem, size = 0x2000, scoped, tag = 'output window, operand 0, single buffered']
    #allocation3 [shape = 's32[1]{0}', space=sflag, size = 0x4, scoped, tag = 'scoped memory for tpu_custom_call.1']
    %12 = vsyncpa [#allocation3], 0
    // Predicated region
    $region2: #{tpu_custom_call.1} parent=1 // pred_check
      _
    $region3: #{tpu_custom_call.1} parent=1 // pred_check_branch
      %14 = sbr.rel (0) target = $region5
    $region4: #{tpu_custom_call.1} parent=1 // pred_region
      _
    $region5: #{tpu_custom_call.1} parent=1 // pred_fallthru
      _
    // Predicated region
    $region6: #{tpu_custom_call.1} parent=1 // pred_check
      _
    $region7: #{tpu_custom_call.1} parent=1 // pred_check_branch
      %16 = sbr.rel (0) target = $region9
    $region8: #{tpu_custom_call.1} parent=1 // pred_region
      _
    $region9: #{tpu_custom_call.1} parent=1 // pred_fallthru
      _
    // Predicated region
    $region10: #{tpu_custom_call.1} parent=1 // pred_check
      _
    $region11: #{tpu_custom_call.1} parent=1 // pred_check_branch
      %18 = sbr.rel (0) target = $region13
    $region12: #{tpu_custom_call.1} parent=1 // pred_region
      _
    $region13: #{tpu_custom_call.1} parent=1 // pred_fallthru
      _
    // Predicated region
    $region14: #{tpu_custom_call.1} parent=1 // pred_check
      _
    $region15: #{tpu_custom_call.1} parent=1 // pred_check_branch
      %20 = sbr.rel (0) target = $region17
    $region16: #{tpu_custom_call.1} parent=1 // pred_region
      _
    $region17: #{tpu_custom_call.1} parent=1 // pred_fallthru
      _
    // Predicated region
    $region18: #{tpu_custom_call.1} parent=1 // pred_check
      _
    $region19: #{tpu_custom_call.1} parent=1 // pred_check_branch
      %22 = sbr.rel (0) target = $region21
    $region20: #{tpu_custom_call.1} parent=1 // pred_region
      _
    $region21: #{tpu_custom_call.1} parent=1 // pred_fallthru
      _
    // Predicated region
    $region22: #{tpu_custom_call.1} parent=1 // pred_check
      _
    $region23: #{tpu_custom_call.1} parent=1 // pred_check_branch
      %24 = sbr.rel (0) target = $region25
    $region24: #{tpu_custom_call.1} parent=1 // pred_region
      _
    $region25: #{tpu_custom_call.1} parent=1 // pred_fallthru
      _
    // Predicated region
    $region26: #{tpu_custom_call.1} parent=1 // pred_check
      _
    $region27: #{tpu_custom_call.1} parent=1 // pred_check_branch
      %26 = sbr.rel (0) target = $region29
    $region28: #{tpu_custom_call.1} parent=1 // pred_region
      _
    $region29: #{tpu_custom_call.1} parent=1 // pred_fallthru
      _
    %v28 = vld [vmem:[%s0] sm:$0xff]
    %v29 = vld [vmem:[%s0 + $0x8] sm:$0xff]
    %v30 = vpack.c.bf16 %v29, %v28
    %v31 = vld [vmem:[%s1] sm:$0xf]
    %v32 = vld [vmem:[%s1 + $0x4] sm:$0xf]
    %v33 = vld [vmem:[%s1 + $0x8] sm:$0xf]
    %v34 = vld [vmem:[%s1 + $0xc] sm:$0xf]
    %v35 = vld [vmem:[%s1 + $0x10] sm:$0xf]
    %v36 = vld [vmem:[%s1 + $0x14] sm:$0xf]
    %v37 = vld [vmem:[%s1 + $0x18] sm:$0xf]
    %v38 = vld [vmem:[%s1 + $0x1c] sm:$0xf]
    %v39 = vld [vmem:[%s2] sm:$0x1]
    %v41 = vperm.slane %v39, 0
    %v51 = vunpack.c.l.b16 %v31
    %v52 = vunpack.c.l.b16 %v32
    %v53 = vunpack.c.l.b16 %v33
    %v54 = vunpack.c.l.b16 %v34
    %v55 = vunpack.c.l.b16 %v35
    %v56 = vunpack.c.l.b16 %v36
    %v57 = vunpack.c.l.b16 %v37
    %v58 = vunpack.c.l.b16 %v38
    %v59 = vpack.c.b16 %v52, %v51
    %v60 = vpack.c.b16 %v54, %v53
    %v61 = vpack.c.b16 %v56, %v55
    %v62 = vpack.c.b16 %v58, %v57
    %vm67 = vcmask 523264
    %v69 = vsel %vm67, %v30, 0
    %71 = vmatpush.bf16.msra.mxu0 0
    %72 = vmatpush.bf16.msra.mxu0 0
    %73 = vmatpush.bf16.msra.mxu0 0
    %74 = vmatpush.bf16.msra.mxu0 0
    %75 = vmatpush.bf16.msra.mxu0 %v62
    %76 = vmatpush.bf16.msra.mxu0 %v61
    %77 = vmatpush.bf16.msra.mxu0 %v60
    %78 = vmatpush.bf16.msra.mxu0 %v59
    %79 = vmatmul.bf16.gmra.mxu0 %v69
    %v80 = vpop.f32.mrf.mxu0
    %v81 = vadd.f32 %v41, %v80
    %v82 = vpop.f32.mrf.mxu0
    %v83 = vadd.f32 %v41, %v82
    %84 = vdwg.mxu0
    %vm85 = vcmask 130048
    %v86 = vsel %vm85, %v81, 0.0
    %87 = vadd.xlane.f32.xlu0 %v86
    %v88 = vpop.xlane.xlu0 %87
    %v89 = vsel %vm85, %v83, 0.0
    %90 = vadd.xlane.f32.xlu0 %v89
    %v91 = vpop.xlane.xlu0 %90
    %v92 = vmul.f32 %v88, 0.0625
    %v93 = vmul.f32 %v91, 0.0625
    %v94 = vsub.f32 %v81, %v92
    %v95 = vsub.f32 %v83, %v93
    %v96 = vmul.f32 %v94, %v94
    %v97 = vmul.f32 %v95, %v95
    %v98 = vsel %vm85, %v96, 0.0
    %99 = vadd.xlane.f32.xlu0 %v98
    %v100 = vpop.xlane.xlu0 %99
    %v101 = vsel %vm85, %v97, 0.0
    %102 = vadd.xlane.f32.xlu0 %v101
    %v103 = vpop.xlane.xlu0 %102
    %v104 = vmul.f32 %v100, 0.0625
    %v105 = vmul.f32 %v103, 0.0625
    %v106 = vadd.f32 %v104, 1e-05
    %v107 = vadd.f32 %v105, 1e-05
    %v108 = vrsqrt.pop %v106
    %v109 = vmul.f32 %v108, %v106
    %v110 = vmul.f32 %v109, %v108
    %v111 = vmul.f32 0.5, %v110
    %v112 = vsub.f32 1.5, %v111
    %v113 = vmul.f32 %v108, %v112
    %vm114 = vweird.f32 %v106
    %vm115 = vweird.f32 %v108
    %vm116 = vmor %vm114, %vm115
    %v117 = vsel %vm116, %v108, %v113
    %v118 = vrsqrt.pop %v107
    %v119 = vmul.f32 %v118, %v107
    %v120 = vmul.f32 %v119, %v118
    %v121 = vmul.f32 0.5, %v120
    %v122 = vsub.f32 1.5, %v121
    %v123 = vmul.f32 %v118, %v122
    %vm124 = vweird.f32 %v107
    %vm125 = vweird.f32 %v118
    %vm126 = vmor %vm124, %vm125
    %v127 = vsel %vm126, %v118, %v123
    %v128 = vmul.f32 %v94, %v117
    %v129 = vmul.f32 %v95, %v127
    %v130 = vld [vmem:[%s3] sm:$0x1]
    %v132 = vperm.slane %v130, 0
    %v134 = vmul.f32 %v128, %v132
    %v135 = vmul.f32 %v129, %v132
    %v136 = vld [vmem:[%s4] sm:$0x1]
    %v138 = vperm.slane %v136, 0
    %v140 = vadd.f32 %v134, %v138
    %v141 = vadd.f32 %v135, %v138
    %v142 = vmax.f32 %v140, 0.0
    %v143 = vmax.f32 %v141, 0.0
    %v144 = vpack.c.bf16 %v143, %v142
    %v145 = vld [vmem:[%s5] sm:$0xf]
    %v146 = vld [vmem:[%s5 + $0x4] sm:$0xf]
    %v147 = vld [vmem:[%s6] sm:$0x1]
    %v149 = vperm.slane %v147, 0
    %v153 = vunpack.c.l.b16 %v145
    %v154 = vunpack.c.l.b16 %v146
    %v155 = vpack.c.b16 %v154, %v153
    %v158 = vsel %vm85, %v144, 0
    %160 = vmatpush.bf16.msra.mxu0 0
    %161 = vmatpush.bf16.msra.mxu0 0
    %162 = vmatpush.bf16.msra.mxu0 0
    %163 = vmatpush.bf16.msra.mxu0 0
    %164 = vmatpush.bf16.msra.mxu0 0
    %165 = vmatpush.bf16.msra.mxu0 0
    %166 = vmatpush.bf16.msra.mxu0 0
    %167 = vmatpush.bf16.msra.mxu0 %v155
    %168 = vmatmul.bf16.gmra.mxu0 %v158
    %v169 = vpop.f32.mrf.mxu0
    %v170 = vadd.f32 %v149, %v169
    %v171 = vpop.f32.mrf.mxu0
    %v172 = vadd.f32 %v149, %v171
    %173 = vdwg.mxu0
    %174 = vst.msk [vmem:[#allocation2] sm:$0xff] %vm67, %v170
    %175 = vst.msk [vmem:[#allocation2 + $0x8] sm:$0xff] %vm67, %v172
    // Predicated region
    $region30: #{tpu_custom_call.1} parent=1 // pred_check
      _
    $region31: #{tpu_custom_call.1} parent=1 // pred_check_branch
      %177 = sbr.rel (0) target = $region33
    $region32: #{tpu_custom_call.1} parent=1 // pred_region
      %179 = vsyncadd [#allocation3], 0
      %s180 = sshll.u32 [#allocation2], 4
      %s181 = int_to_ptr.vmem [resolvable:$true] %s180
      %s182 = sshll.u32 %s7, 4
      %s183 = int_to_ptr.hbm [resolvable:$true] %s182
      %188 = dma.vmem_to_hbm [thread:$0]  %s181, 256, %s183, [#allocation3], 128, 128, 8
    $region33: #{tpu_custom_call.1} parent=1 // pred_fallthru
      _
    // Predicated region
    $region34: #{tpu_custom_call.1} parent=1 // pred_check
      _
    $region35: #{tpu_custom_call.1} parent=1 // pred_check_branch
      %190 = sbr.rel (0) target = $region37
    $region36: #{tpu_custom_call.1} parent=1 // pred_region
      %192 = dma.done [#allocation3], 256
    $region37: #{tpu_custom_call.1} parent=1 // pred_fallthru
      _
    %193 = vsyncpa [#allocation3], 1

</llo_original>
